<compile_context>
chip_gen: v7x
topology: tpu7x:2x2x1
jax: 0.10.0
libtpu: 0.0.40
codegen_flags: <defaults>
</compile_context>

<pallas_src>
import jax
import jax.numpy as jnp
from jax.experimental import pallas as pl
from jax.experimental.pallas import tpu as pltpu


def _round_up(v, m):
    return (v + m - 1) // m * m


def _vmem_budget_bytes():
    """Per-generation VMEM budget with headroom for compiler scratch."""
    try:
        cap = int(pltpu.get_tpu_info().vmem_capacity_bytes)
    except Exception:
        cap = 64 << 20                      # conservative default = v7x per-TC VMEM
    # ~48 MiB on v7x (64 MiB physical), ~96 MiB on v5e/v6e (128 MiB physical).
    return min(cap * 3 // 4, 96 << 20)


def _linear_kernel(x_ref, w_ref, b_ref, o_ref):
    # mean = x @ W + b; bf16 MXU matmul with f32 accumulate, bias added in f32.
    x = x_ref[...].astype(w_ref.dtype)          # no-op if x already bf16
    acc = jnp.dot(x, w_ref[...], preferred_element_type=jnp.float32)
    o_ref[...] = (acc + b_ref[...]).astype(o_ref.dtype)


def _select_tiles(B, in_dim, out_pad, x_isize, out_isize, vmem_budget):
    """Pick (TM, num_m, TN, num_n)."""
    # ---- N tile (output features) ----
    if out_pad <= 1024:
        TN, num_n = out_pad, 1              # single full-extent N block, no padding
    else:
        TN = 128
        for cand in (1024, 512, 384, 256, 128):
            if out_pad % cand == 0:
                TN = cand
                break
        num_n = out_pad // TN

    # ---- M tile (flattened batch) ----
    if B <= 8:
        return B, 1, TN, num_n

    # Bound 2 * (x_tile + w_tile + b_tile + out_tile) <= vmem_budget.
    fixed = 2 * (in_dim * TN * 2 + TN * 4)               # bf16 weight + f32 bias, double-buffered
    per_row = 2 * (in_dim * x_isize + TN * out_isize)    # x row + out row, double-buffered
    tm_vmem = max((vmem_budget - fixed) // per_row, 8)
    tm_cap = min(1024, tm_vmem)
    # TODO(synk): add a K (in_dim) reduction grid axis + f32 accumulator scratch
    # (bias added under pl.when(k == last)) if in_dim ever grows so large that a
    # full-K weight tile alone no longer fits the VMEM budget.

    if B >= 512:
        tm_target = pl.cdiv(B, 4)           # >= 4 M steps -> pipelined DMA/compute/writeback
    elif B >= 16:
        tm_target = pl.cdiv(B, 2)           # >= 2 M blocks -> both v7x TensorCores busy
    else:
        tm_target = B

    TM = min(int(tm_cap), _round_up(int(tm_target), 8))
    TM = max(8, (TM // 8) * 8)
    num_m = pl.cdiv(B, TM)
    return TM, int(num_m), TN, num_n


def slot_obs_decoder_mean(x, w_packed, b_packed, out_dim):
    """fc(x) with a tiled Pallas kernel.

    x:        (..., in_dim)       float32 (or bfloat16)
    w_packed: (in_dim, out_pad)   bfloat16, pre-transposed (+zero-padded only if N is tiled)
    b_packed: (1, out_pad)        float32
    returns mean: (..., out_dim)  in x.dtype
    """
    lead_shape = x.shape[:-1]
    in_dim = x.shape[-1]
    x2 = x.reshape(-1, in_dim)
    B = x2.shape[0]

    in_dim_w, out_pad = w_packed.shape
    assert in_dim == in_dim_w

    out_dtype = x.dtype
    x_isize = jnp.dtype(x2.dtype).itemsize
    w_isize = jnp.dtype(w_packed.dtype).itemsize
    b_isize = jnp.dtype(b_packed.dtype).itemsize
    out_isize = jnp.dtype(out_dtype).itemsize

    vmem_budget = _vmem_budget_bytes()
    TM, num_m, TN, num_n = _select_tiles(B, in_dim, out_pad, x_isize, out_isize, vmem_budget)

    # Double-buffered tile footprint; always set an explicit scoped-VMEM limit
    # (v5e default is only 16 MiB) but never the full physical VMEM.
    vmem_est = 2 * (TM * in_dim * x_isize + in_dim * TN * w_isize + TN * b_isize + TM * TN * out_isize)
    vmem_limit = int(min(max(vmem_est * 2, 32 << 20), vmem_budget))

    cost = pl.CostEstimate(
        flops=2 * B * in_dim * out_pad,
        transcendentals=0,
        bytes_accessed=int(B * in_dim * x_isize                       # x streamed once (N innermost)
                           + num_m * in_dim * out_pad * w_isize       # weight re-read per M block
                           + num_m * out_pad * b_isize
                           + B * out_pad * out_isize),
    )

    mean = pl.pallas_call(
        _linear_kernel,
        out_shape=jax.ShapeDtypeStruct((B, out_pad), out_dtype),
        grid_spec=pltpu.PrefetchScalarGridSpec(
            num_scalar_prefetch=0,
            grid=(num_m, num_n),                                   # N innermost: big x tile stays resident
            in_specs=[
                pl.BlockSpec((TM, in_dim), lambda m, n: (m, 0)),   # x tile, DMA'd once per M block
                pl.BlockSpec((in_dim, TN), lambda m, n: (0, n)),   # small bf16 weight tile, streamed
                pl.BlockSpec((1, TN), lambda m, n: (0, n)),        # bias tile
            ],
            out_specs=pl.BlockSpec((TM, TN), lambda m, n: (m, n)),
        ),
        compiler_params=pltpu.CompilerParams(
            dimension_semantics=("parallel", "parallel"),
            vmem_limit_bytes=vmem_limit,
        ),
        cost_estimate=cost,
    )(x2, w_packed, b_packed)

    if out_pad != out_dim:
        # Only reachable when out_dim > 1024 and not a multiple of 128.
        # TODO(synk): fuse this slice into the downstream consumer (e.g. a fused
        # log_prob kernel) instead of paying an extra HBM copy for dead columns.
        mean = mean[:, :out_dim]
    return mean.reshape(lead_shape + (out_dim,))


class IndependentNormal:
    """Minimal stand-in for td.Independent(td.Normal(mean, 1), 1)."""

    def __init__(self, mean, event_dims=1):
        self.mean = mean
        self.event_dims = event_dims
        self._scale = 1.0                      # scalar; never materialized as a full array

    @property
    def scale(self):
        return jnp.broadcast_to(jnp.asarray(self._scale, self.mean.dtype), self.mean.shape)

    def log_prob(self, value):
        # TODO(synk): fuse log_prob (sum of -0.5*(v-mean)^2) into the Pallas kernel
        # when log_prob is the sole consumer, to avoid re-reading `mean` from HBM.
        lp = -0.5 * jnp.square(value - self.mean) - 0.5 * jnp.log(2.0 * jnp.pi)
        return jnp.sum(lp, axis=tuple(range(-self.event_dims, 0)))

    def sample(self, key):
        return self.mean + self._scale * jax.random.normal(key, self.mean.shape, self.mean.dtype)


class SlotObsDecoder:
    """JAX/Pallas port of dreamerv2.models.slot_pixel.SlotObsDecoder."""

    def __init__(self, slot_size, num_slots, key, param_dtype=jnp.bfloat16):
        emb_dim = slot_size * num_slots
        in_dim = 2 * emb_dim
        self.out_dim = emb_dim
        k_w, k_b = jax.random.split(key)
        # Deterministic init matching nn.Linear's uniform(-1/sqrt(in), 1/sqrt(in)).
        bound = 1.0 / float(in_dim) ** 0.5
        self.weight = jax.random.uniform(
            k_w, (emb_dim, in_dim), jnp.float32, -bound, bound)   # PyTorch (out, in) layout, f32 master copy
        self.bias = jax.random.uniform(
            k_b, (emb_dim,), jnp.float32, -bound, bound)

        # One-time packing: transpose to (in, out) and cast to bf16 (deliberate
        # precision change vs. the f32 PyTorch Linear).  Pad out-features to a
        # 128 multiple ONLY if N will be tiled (out_dim > 1024); otherwise the
        # output is stored unpadded and no post-kernel slice is needed.
        out_pad = emb_dim if emb_dim <= 1024 else _round_up(emb_dim, 128)
        w_t = self.weight.T.astype(param_dtype)                    # (in_dim, emb_dim)
        self.w_packed = jnp.pad(w_t, ((0, 0), (0, out_pad - emb_dim)))
        self.b_packed = jnp.pad(self.bias, (0, out_pad - emb_dim)).reshape(1, out_pad)

    def __call__(self, x):
        mean = slot_obs_decoder_mean(x, self.w_packed, self.b_packed, self.out_dim)
        return IndependentNormal(mean, event_dims=1)


if __name__ == "__main__":
    key = jax.random.PRNGKey(0)
    k_param, k_x, k_x2 = jax.random.split(key, 3)

    slot_size, num_slots = 8, 4          # emb_dim = 32, in_dim = 64
    batch = 8

    decoder = SlotObsDecoder(slot_size, num_slots, k_param)
    x = jax.random.normal(k_x, (batch, 2 * slot_size * num_slots), jnp.float32)

    dist = decoder(x)
    mean = jax.block_until_ready(dist.mean)
    assert mean.shape == (batch, slot_size * num_slots)
    assert mean.dtype == x.dtype

    # Matched reference: same bf16 operands, f32 accumulate.
    ref_bf16 = jnp.dot(x.astype(jnp.bfloat16),
                       decoder.w_packed[:, :decoder.out_dim],
                       preferred_element_type=jnp.float32) + decoder.bias
    # Full-precision reference (loose tolerance covers the bf16 weight cast).
    ref_f32 = x @ decoder.weight.T + decoder.bias

    assert jnp.allclose(mean, ref_bf16, atol=1e-4, rtol=1e-4)
    assert jnp.allclose(mean, ref_f32, atol=5e-2, rtol=5e-2)

    # Exercise the multi-M-block path with a partial (masked) last block.
    x_big = jax.random.normal(k_x2, (40, 2 * slot_size * num_slots), jnp.float32)
    mean_big = jax.block_until_ready(decoder(x_big).mean)
    ref_big = jnp.dot(x_big.astype(jnp.bfloat16),
                      decoder.w_packed[:, :decoder.out_dim],
                      preferred_element_type=jnp.float32) + decoder.bias
    assert mean_big.shape == (40, slot_size * num_slots)
    assert jnp.allclose(mean_big, ref_big, atol=1e-4, rtol=1e-4)

    # Distribution wrapper sanity check.
    lp = jax.block_until_ready(dist.log_prob(ref_f32))
    assert lp.shape == (batch,)

    print("KERNEL_OK")
</pallas_src>

<mosaic_0001>
module attributes {stable_mosaic.version = 11 : i64} {
  func.func @_linear_kernel(%arg0: i32, %arg1: i32, %arg2: memref<8x64xf32, #tpu.memory_space<vmem>>, %arg3: memref<64x32xbf16, #tpu.memory_space<vmem>>, %arg4: memref<1x32xf32, #tpu.memory_space<vmem>>, %arg5: memref<8x32xf32, #tpu.memory_space<vmem>>) attributes {dimension_semantics = [#tpu.dimension_semantics<parallel>, #tpu.dimension_semantics<parallel>], iteration_bounds = array<i64: 1, 1>, scalar_prefetch = 0 : i64, scratch_operands = 0 : i64, tpu.core_type = #tpu.core_type<tc>, window_params = [{transform_indices = @transform_0, window_bounds = array<i64: 8, 64>}, {transform_indices = @transform_1, window_bounds = array<i64: 64, 32>}, {transform_indices = @transform_2, window_bounds = array<i64: 1, 32>}, {transform_indices = @transform_3, window_bounds = array<i64: 8, 32>}]} {
    %c0 = arith.constant 0 : index
    %c0_0 = arith.constant 0 : index
    %0 = vector.load %arg2[%c0, %c0_0] : memref<8x64xf32, #tpu.memory_space<vmem>>, vector<8x64xf32>
    %1 = arith.truncf %0 : vector<8x64xf32> to vector<8x64xbf16>
    %c0_1 = arith.constant 0 : index
    %c0_2 = arith.constant 0 : index
    %2 = vector.load %arg3[%c0_1, %c0_2] : memref<64x32xbf16, #tpu.memory_space<vmem>>, vector<64x32xbf16>
    %cst = arith.constant dense<0.000000e+00> : vector<8x32xf32>
    %3 = tpu.matmul %1, %2, %cst {dimension_numbers = #tpu.dot_dimension_numbers<[1], [0], [0], [1], [0, 0, 1, 1], [], []>} : vector<8x64xbf16>, vector<64x32xbf16>, vector<8x32xf32> -> vector<8x32xf32>
    %c0_3 = arith.constant 0 : index
    %c0_4 = arith.constant 0 : index
    %4 = vector.load %arg4[%c0_3, %c0_4] : memref<1x32xf32, #tpu.memory_space<vmem>>, vector<1x32xf32>
    %5 = vector.broadcast %4 : vector<1x32xf32> to vector<8x32xf32>
    %6 = arith.addf %3, %5 : vector<8x32xf32>
    %c0_5 = arith.constant 0 : index
    %c0_6 = arith.constant 0 : index
    %7 = vector.load %arg5[%c0_5, %c0_6] : memref<8x32xf32, #tpu.memory_space<vmem>>, vector<8x32xf32>
    tpu.vector_store %arg5[%c0_5, %c0_6], %6 {strides = array<i32>} : memref<8x32xf32, #tpu.memory_space<vmem>>, vector<8x32xf32>,
    return
  }
  func.func @transform_0(%arg0: i32, %arg1: i32) -> (i32, i32) {
    %c0_i32 = arith.constant 0 : i32
    %c0_i32_0 = arith.constant 0 : i32
    return %arg0, %c0_i32 : i32, i32
  }
  func.func @transform_1(%arg0: i32, %arg1: i32) -> (i32, i32) {
    %c0_i32 = arith.constant 0 : i32
    %c0_i32_0 = arith.constant 0 : i32
    return %c0_i32, %arg1 : i32, i32
  }
  func.func @transform_2(%arg0: i32, %arg1: i32) -> (i32, i32) {
    %c0_i32 = arith.constant 0 : i32
    %c0_i32_0 = arith.constant 0 : i32
    return %c0_i32, %arg1 : i32, i32
  }
  func.func @transform_3(%arg0: i32, %arg1: i32) -> (i32, i32) {
    %c0_i32 = arith.constant 0 : i32
    return %arg0, %arg1 : i32, i32
  }
}

</mosaic_0001>

<llo_original>
// kernel: tpu_custom_call.1
$region0: #{tpu_custom_call.1}
  #allocation0 [shape = 'u32[]', space=smem, size = 0x4, offset = 0x4, fixed_abs, tag = 'smem constant byte address 0x4 - core index']
  #allocation1 [shape = 'u32[144,128]{1,0:T(1,128)}', space=vmem, size = 0x12000, scoped, tag = 'internal scratch']
  %s0 = inlined_call_operand.vmem [shape: f32[8,64], index: 0, kind: input, shape index: {}]
  %s1 = inlined_call_operand.vmem [shape: bf16[64,32], index: 1, kind: input, shape index: {}]
  %s2 = inlined_call_operand.vmem [shape: f32[1,32], index: 2, kind: input, shape index: {}]
  %s3 = inlined_call_operand.hbm [shape: f32[8,32], index: 3, kind: output, shape index: {}]
  %s4 = sld [smem:[#allocation0]]
  $region22: #{tpu_custom_call.1} parent=0
    _
  %s6 = ssub.s32 1, %s4
  %s7 = scalar_select 0, %s6, %s4
  $region1: #{tpu_custom_call.1} parent=0
    #allocation2 [shape = 'u8[4096]{0}', space=vmem, size = 0x1000, scoped, tag = 'output window, operand 0, single buffered']
    #allocation3 [shape = 's32[1]{0}', space=sflag, size = 0x4, scoped, tag = 'scoped memory for tpu_custom_call.1']
    %8 = vsyncpa [#allocation3], 0
    // Predicated region
    $region2: #{tpu_custom_call.1} parent=1 // pred_check
      _
    $region3: #{tpu_custom_call.1} parent=1 // pred_check_branch
      %10 = sbr.rel (0) target = $region5
    $region4: #{tpu_custom_call.1} parent=1 // pred_region
      _
    $region5: #{tpu_custom_call.1} parent=1 // pred_fallthru
      _
    // Predicated region
    $region6: #{tpu_custom_call.1} parent=1 // pred_check
      _
    $region7: #{tpu_custom_call.1} parent=1 // pred_check_branch
      %12 = sbr.rel (0) target = $region9
    $region8: #{tpu_custom_call.1} parent=1 // pred_region
      _
    $region9: #{tpu_custom_call.1} parent=1 // pred_fallthru
      _
    // Predicated region
    $region10: #{tpu_custom_call.1} parent=1 // pred_check
      _
    $region11: #{tpu_custom_call.1} parent=1 // pred_check_branch
      %14 = sbr.rel (0) target = $region13
    $region12: #{tpu_custom_call.1} parent=1 // pred_region
      _
    $region13: #{tpu_custom_call.1} parent=1 // pred_fallthru
      _
    %v16 = vld [vmem:[%s0] sm:$0xff]
    %v17 = vpack.c.bf16 %v16, %v16
    %v18 = vld [vmem:[%s1] sm:$0xf]
    %v19 = vld [vmem:[%s1 + $0x4] sm:$0xf]
    %v20 = vld [vmem:[%s1 + $0x8] sm:$0xf]
    %v21 = vld [vmem:[%s1 + $0xc] sm:$0xf]
    %v22 = vld [vmem:[%s1 + $0x10] sm:$0xf]
    %v23 = vld [vmem:[%s1 + $0x14] sm:$0xf]
    %v24 = vld [vmem:[%s1 + $0x18] sm:$0xf]
    %v25 = vld [vmem:[%s1 + $0x1c] sm:$0xf]
    %v26 = vld [vmem:[%s2] sm:$0x1]
    %v28 = vlaneseq
    %v29 = vshrl.u32 %v28, 7
    %v30 = vsub.s32 0, %v29
    %v31 = vrot.slane %v26, %v30
    %v41 = vunpack.c.l.b16 %v18
    %v42 = vunpack.c.l.b16 %v19
    %v43 = vunpack.c.l.b16 %v20
    %v44 = vunpack.c.l.b16 %v21
    %v45 = vunpack.c.l.b16 %v22
    %v46 = vunpack.c.l.b16 %v23
    %v47 = vunpack.c.l.b16 %v24
    %v48 = vunpack.c.l.b16 %v25
    %v49 = vpack.c.b16 %v42, %v41
    %v50 = vpack.c.b16 %v44, %v43
    %v51 = vpack.c.b16 %v46, %v45
    %v52 = vpack.c.b16 %v48, %v47
    %vm57 = vcmask 523264
    %v59 = vsel %vm57, %v17, 0
    %61 = vmatprep.subr.bf16.mxu0 0
    %62 = vmatpush1.bf16.msra.mxu0 %v49
    %63 = vmatprep.subr.bf16.mxu0 0
    %64 = vmatpush1.bf16.msra.mxu0 %v50
    %65 = vmatprep.subr.bf16.mxu0 0
    %66 = vmatpush1.bf16.msra.mxu0 %v51
    %67 = vmatprep.subr.bf16.mxu0 0
    %68 = vmatpush1.bf16.msra.mxu0 %v52
    %69 = vmatprep.subr.bf16.mxu0 0
    %70 = vmatpush1.bf16.msra.mxu0 0
    %71 = vmatprep.subr.bf16.mxu0 0
    %72 = vmatpush1.bf16.msra.mxu0 0
    %73 = vmatprep.subr.bf16.mxu0 0
    %74 = vmatpush1.bf16.msra.mxu0 0
    %75 = vmatprep.subr.bf16.mxu0 0
    %76 = vmatpush1.bf16.msra.mxu0 0
    %77 = vmatprep.subr.bf16.mxu0 0
    %78 = vmatpush1.bf16.msra.mxu0 0
    %79 = vmatprep.subr.bf16.mxu0 0
    %80 = vmatpush1.bf16.msra.mxu0 0
    %81 = vmatprep.subr.bf16.mxu0 0
    %82 = vmatpush1.bf16.msra.mxu0 0
    %83 = vmatprep.subr.bf16.mxu0 0
    %84 = vmatpush1.bf16.msra.mxu0 0
    %85 = vmatprep.subr.bf16.mxu0 0
    %86 = vmatpush1.bf16.msra.mxu0 0
    %87 = vmatprep.subr.bf16.mxu0 0
    %88 = vmatpush1.bf16.msra.mxu0 0
    %89 = vmatprep.subr.bf16.mxu0 0
    %90 = vmatpush1.bf16.msra.mxu0 0
    %91 = vmatprep.subr.bf16.mxu0 0
    %92 = vmatpush1.bf16.msra.mxu0 0
    %93 = vmatprep.mubr.bf16.mxu0 0
    %94 = vmatmul.mubr.bf16.gmra.mrb[0].mxu0 %v59
    %v95 = vpop.f32.mrb[0].mxu0
    %v96 = vadd.f32 %v31, %v95
    %v97 = vpop.f32.mrb[0].mxu0
    %v98 = vpop.f32.mrb[0].mxu0
    %v99 = vpop.f32.mrb[0].mxu0
    %100 = vdwg.mxu0
    %vm101 = vcmask 261120
    %102 = vst.msk [vmem:[#allocation2] sm:$0xff] %vm101, %v96
    // Predicated region
    $region14: #{tpu_custom_call.1} parent=1 // pred_check
      _
    $region15: #{tpu_custom_call.1} parent=1 // pred_check_branch
      %104 = sbr.rel (0) target = $region17
    $region16: #{tpu_custom_call.1} parent=1 // pred_region
      %s106 = ssub.s32 128, 128
      %107 = vsyncadd [#allocation3], %s106
      %s109 = sshll.u32 [#allocation2], 4
      %s110 = int_to_ptr.vmem [resolvable:$true] %s109
      %112 = dma.vmem_to_hbm [thread:$0]  %s110, 128, %s3, [#allocation3]
    $region17: #{tpu_custom_call.1} parent=1 // pred_fallthru
      _
    // Predicated region
    $region18: #{tpu_custom_call.1} parent=1 // pred_check
      _
    $region19: #{tpu_custom_call.1} parent=1 // pred_check_branch
      %114 = sbr.rel (0) target = $region21
    $region20: #{tpu_custom_call.1} parent=1 // pred_region
      %115 = dma.done [#allocation3], 128
    $region21: #{tpu_custom_call.1} parent=1 // pred_fallthru
      _
    %116 = vsyncpa [#allocation3], 1

</llo_original>
